<compile_context>
chip_gen: v7x
topology: tpu7x:2x2x1
jax: 0.10.0
libtpu: 0.0.40
codegen_flags: <defaults>
</compile_context>

<pallas_src>
import jax
import jax.numpy as jnp
import numpy as np
from jax.experimental import pallas as pl
from jax.experimental.pallas import tpu as pltpu

SPLIT_SIZE = 224 // 4  # 56, hardcoded in the PyTorch module


def _split_rows_kernel(x_ref, *out_refs):
    # x_ref: (tr, W) VMEM tile.  Each output gets a static contiguous lane-slice of
    # the tile — no compute, just vreg moves that hide under the HBM DMA.
    start = 0
    for o_ref in out_refs:
        w = o_ref.shape[-1]
        o_ref[...] = x_ref[:, start:start + w]
        start += w


def split_pallas(x, split_size=SPLIT_SIZE, axis=3, row_tile=2048):
    assert axis == 3 and x.ndim == 4, "kernel is specialized to the last (W) axis"
    N, C, H, W = x.shape

    # torch.split semantics: chunks of `split_size`, last chunk may be smaller.
    sizes = []
    rem = W
    while rem > 0:
        s = min(split_size, rem)
        sizes.append(s)
        rem -= s

    # Fuse leading dims into a single rows axis (free reshape, W stays minor-most).
    R = N * C * H
    x2 = x.reshape(R, W)

    # Block == full dim for small inputs (always legal); otherwise a multiple-of-8
    # row tile (Pallas masks the partial final block).
    tr = R if R <= row_tile else row_tile
    grid = (pl.cdiv(R, tr),)

    in_specs = [pl.BlockSpec((tr, W), lambda r: (r, 0))]
    out_specs = tuple(pl.BlockSpec((tr, s), lambda r: (r, 0)) for s in sizes)
    out_shapes = tuple(jax.ShapeDtypeStruct((R, s), x.dtype) for s in sizes)

    outs = pl.pallas_call(
        _split_rows_kernel,
        grid=grid,
        in_specs=in_specs,
        out_specs=out_specs,
        out_shape=out_shapes,
        compiler_params=pltpu.CompilerParams(
            dimension_semantics=("parallel",),      # megacore-shard the row grid
            vmem_limit_bytes=32 * 1024 * 1024,      # generation-portable explicit cap
        ),
    )(x2)

    # Free reshapes back to the NCHW chunk shapes (bytes already contiguous).
    return tuple(o.reshape(N, C, H, s) for o, s in zip(outs, sizes))


if __name__ == "__main__":
    key = jax.random.PRNGKey(0)
    # W = 224 so the module's hardcoded split size (224//4 == 56) yields the intended
    # 4-way split; other dims kept small.
    x = jax.random.normal(key, (2, 4, 8, 224), dtype=jnp.float32)

    outs = split_pallas(x)
    outs = jax.block_until_ready(outs)

    # Reference: plain slicing (identical semantics to torch.split(x, 56, 3)).
    num_chunks = x.shape[3] // SPLIT_SIZE + (1 if x.shape[3] % SPLIT_SIZE else 0)
    ref = [x[..., i * SPLIT_SIZE:(i + 1) * SPLIT_SIZE] for i in range(num_chunks)]

    assert len(outs) == len(ref)
    for o, r in zip(outs, ref):
        assert o.shape == r.shape and o.dtype == r.dtype
        np.testing.assert_array_equal(np.asarray(o), np.asarray(r))

    print("KERNEL_OK")
</pallas_src>

<mosaic_0001>
module attributes {stable_mosaic.version = 11 : i64} {
  func.func @_split_rows_kernel(%arg0: i32, %arg1: memref<64x224xf32, #tpu.memory_space<vmem>>, %arg2: memref<64x56xf32, #tpu.memory_space<vmem>>, %arg3: memref<64x56xf32, #tpu.memory_space<vmem>>, %arg4: memref<64x56xf32, #tpu.memory_space<vmem>>, %arg5: memref<64x56xf32, #tpu.memory_space<vmem>>) attributes {dimension_semantics = [#tpu.dimension_semantics<parallel>], iteration_bounds = array<i64: 1>, scalar_prefetch = 0 : i64, scratch_operands = 0 : i64, tpu.core_type = #tpu.core_type<tc>, window_params = [{transform_indices = @transform_0, window_bounds = array<i64: 64, 224>}, {transform_indices = @transform_1, window_bounds = array<i64: 64, 56>}, {transform_indices = @transform_2, window_bounds = array<i64: 64, 56>}, {transform_indices = @transform_3, window_bounds = array<i64: 64, 56>}, {transform_indices = @transform_4, window_bounds = array<i64: 64, 56>}]} {
    %c0 = arith.constant 0 : index
    %c0_0 = arith.constant 0 : index
    %0 = vector.load %arg1[%c0, %c0_0] : memref<64x224xf32, #tpu.memory_space<vmem>>, vector<64x56xf32>
    %c0_1 = arith.constant 0 : index
    %c0_2 = arith.constant 0 : index
    %1 = vector.load %arg2[%c0_1, %c0_2] : memref<64x56xf32, #tpu.memory_space<vmem>>, vector<64x56xf32>
    tpu.vector_store %arg2[%c0_1, %c0_2], %0 {strides = array<i32>} : memref<64x56xf32, #tpu.memory_space<vmem>>, vector<64x56xf32>,
    %c0_3 = arith.constant 0 : index
    %c56 = arith.constant 56 : index
    %2 = vector.load %arg1[%c0_3, %c56] : memref<64x224xf32, #tpu.memory_space<vmem>>, vector<64x56xf32>
    %c0_4 = arith.constant 0 : index
    %c0_5 = arith.constant 0 : index
    %3 = vector.load %arg3[%c0_4, %c0_5] : memref<64x56xf32, #tpu.memory_space<vmem>>, vector<64x56xf32>
    tpu.vector_store %arg3[%c0_4, %c0_5], %2 {strides = array<i32>} : memref<64x56xf32, #tpu.memory_space<vmem>>, vector<64x56xf32>,
    %c0_6 = arith.constant 0 : index
    %c112 = arith.constant 112 : index
    %4 = vector.load %arg1[%c0_6, %c112] : memref<64x224xf32, #tpu.memory_space<vmem>>, vector<64x56xf32>
    %c0_7 = arith.constant 0 : index
    %c0_8 = arith.constant 0 : index
    %5 = vector.load %arg4[%c0_7, %c0_8] : memref<64x56xf32, #tpu.memory_space<vmem>>, vector<64x56xf32>
    tpu.vector_store %arg4[%c0_7, %c0_8], %4 {strides = array<i32>} : memref<64x56xf32, #tpu.memory_space<vmem>>, vector<64x56xf32>,
    %c0_9 = arith.constant 0 : index
    %c168 = arith.constant 168 : index
    %6 = vector.load %arg1[%c0_9, %c168] : memref<64x224xf32, #tpu.memory_space<vmem>>, vector<64x56xf32>
    %c0_10 = arith.constant 0 : index
    %c0_11 = arith.constant 0 : index
    %7 = vector.load %arg5[%c0_10, %c0_11] : memref<64x56xf32, #tpu.memory_space<vmem>>, vector<64x56xf32>
    tpu.vector_store %arg5[%c0_10, %c0_11], %6 {strides = array<i32>} : memref<64x56xf32, #tpu.memory_space<vmem>>, vector<64x56xf32>,
    return
  }
  func.func @transform_0(%arg0: i32) -> (i32, i32) {
    %c0_i32 = arith.constant 0 : i32
    %c0_i32_0 = arith.constant 0 : i32
    return %arg0, %c0_i32 : i32, i32
  }
  func.func @transform_1(%arg0: i32) -> (i32, i32) {
    %c0_i32 = arith.constant 0 : i32
    %c0_i32_0 = arith.constant 0 : i32
    return %arg0, %c0_i32 : i32, i32
  }
  func.func @transform_2(%arg0: i32) -> (i32, i32) {
    %c0_i32 = arith.constant 0 : i32
    %c0_i32_0 = arith.constant 0 : i32
    return %arg0, %c0_i32 : i32, i32
  }
  func.func @transform_3(%arg0: i32) -> (i32, i32) {
    %c0_i32 = arith.constant 0 : i32
    %c0_i32_0 = arith.constant 0 : i32
    return %arg0, %c0_i32 : i32, i32
  }
  func.func @transform_4(%arg0: i32) -> (i32, i32) {
    %c0_i32 = arith.constant 0 : i32
    %c0_i32_0 = arith.constant 0 : i32
    return %arg0, %c0_i32 : i32, i32
  }
}

</mosaic_0001>

<llo_original>
// kernel: tpu_custom_call.1
$region0: #{tpu_custom_call.1}
  #allocation0 [shape = 'u32[]', space=smem, size = 0x4, offset = 0x4, fixed_abs, tag = 'smem constant byte address 0x4 - core index']
  #allocation1 [shape = 'u32[144,128]{1,0:T(1,128)}', space=vmem, size = 0x12000, scoped, tag = 'internal scratch']
  %s0 = inlined_call_operand.hbm [shape: f32[64,224], index: 0, kind: input, shape index: {}]
  %s1 = inlined_call_operand.vmem [shape: f32[64,56], index: 1, kind: output, shape index: {0}]
  %s2 = inlined_call_operand.vmem [shape: f32[64,56], index: 2, kind: output, shape index: {1}]
  %s3 = inlined_call_operand.vmem [shape: f32[64,56], index: 3, kind: output, shape index: {2}]
  %s4 = inlined_call_operand.vmem [shape: f32[64,56], index: 4, kind: output, shape index: {3}]
  %5 = xla_tuple %s1, %s2, %s3, %s4
  %s6 = sld [smem:[#allocation0]]
  $region42: #{tpu_custom_call.1} parent=0
    _
  %s8 = ssub.s32 1, %s6
  %s9 = scalar_select 0, %s8, %s6
  $region1: #{tpu_custom_call.1} parent=0
    #allocation2 [shape = 'u8[65536]{0}', space=vmem, size = 0x10000, scoped, tag = 'input window, operand 0, single buffered']
    #allocation3 [shape = 's32[1]{0}', space=sflag, size = 0x4, scoped, tag = 'scoped memory for tpu_custom_call.1']
    %10 = vsyncpa [#allocation3], 0
    // Predicated region
    $region2: #{tpu_custom_call.1} parent=1 // pred_check
      _
    $region3: #{tpu_custom_call.1} parent=1 // pred_check_branch
      %12 = sbr.rel (0) target = $region5
    $region4: #{tpu_custom_call.1} parent=1 // pred_region
      %s14 = ssub.s32 2048, 2048
      %15 = vsyncadd [#allocation3], %s14
      %s16 = sshll.u32 [#allocation2], 4
      %s17 = int_to_ptr.vmem [resolvable:$true] %s16
      %22 = dma.hbm_to_vmem [thread:$0]  %s0, 2048, %s17, [#allocation3], 256, 256, 16
    $region5: #{tpu_custom_call.1} parent=1 // pred_fallthru
      _
    // Predicated region
    $region6: #{tpu_custom_call.1} parent=1 // pred_check
      _
    $region7: #{tpu_custom_call.1} parent=1 // pred_check_branch
      %24 = sbr.rel (0) target = $region9
    $region8: #{tpu_custom_call.1} parent=1 // pred_region
      %25 = dma.done [#allocation3], 2048
    $region9: #{tpu_custom_call.1} parent=1 // pred_fallthru
      _
    %v26 = vld [vmem:[#allocation2] sm:$0xff]
    %v27 = vld [vmem:[#allocation2 + $0x10] sm:$0xff]
    %v28 = vld [vmem:[#allocation2 + $0x20] sm:$0xff]
    %v29 = vld [vmem:[#allocation2 + $0x30] sm:$0xff]
    %v30 = vld [vmem:[#allocation2 + $0x40] sm:$0xff]
    %v31 = vld [vmem:[#allocation2 + $0x50] sm:$0xff]
    %v32 = vld [vmem:[#allocation2 + $0x60] sm:$0xff]
    %v33 = vld [vmem:[#allocation2 + $0x70] sm:$0xff]
    %vm34 = vcmask 457728
    %35 = vst.msk [vmem:[%s1] sm:$0xff] %vm34, %v26
    %36 = vst.msk [vmem:[%s1 + $0x8] sm:$0xff] %vm34, %v27
    %37 = vst.msk [vmem:[%s1 + $0x10] sm:$0xff] %vm34, %v28
    %38 = vst.msk [vmem:[%s1 + $0x18] sm:$0xff] %vm34, %v29
    %39 = vst.msk [vmem:[%s1 + $0x20] sm:$0xff] %vm34, %v30
    %40 = vst.msk [vmem:[%s1 + $0x28] sm:$0xff] %vm34, %v31
    %41 = vst.msk [vmem:[%s1 + $0x30] sm:$0xff] %vm34, %v32
    %42 = vst.msk [vmem:[%s1 + $0x38] sm:$0xff] %vm34, %v33
    %v43 = vld [vmem:[#allocation2] sm:$0xff]
    %v44 = vld [vmem:[#allocation2 + $0x10] sm:$0xff]
    %v45 = vld [vmem:[#allocation2 + $0x20] sm:$0xff]
    %v46 = vld [vmem:[#allocation2 + $0x30] sm:$0xff]
    %v47 = vld [vmem:[#allocation2 + $0x40] sm:$0xff]
    %v48 = vld [vmem:[#allocation2 + $0x50] sm:$0xff]
    %v49 = vld [vmem:[#allocation2 + $0x60] sm:$0xff]
    %v50 = vld [vmem:[#allocation2 + $0x70] sm:$0xff]
    %59 = vrot.lane.b32.xlu0 %v43, 72
    %v60 = vpop.permute.xlu0 %59
    %61 = vrot.lane.b32.xlu0 %v44, 72
    %v62 = vpop.permute.xlu0 %61
    %63 = vrot.lane.b32.xlu0 %v45, 72
    %v64 = vpop.permute.xlu0 %63
    %65 = vrot.lane.b32.xlu0 %v46, 72
    %v66 = vpop.permute.xlu0 %65
    %67 = vrot.lane.b32.xlu0 %v47, 72
    %v68 = vpop.permute.xlu0 %67
    %69 = vrot.lane.b32.xlu0 %v48, 72
    %v70 = vpop.permute.xlu0 %69
    %71 = vrot.lane.b32.xlu0 %v49, 72
    %v72 = vpop.permute.xlu0 %71
    %73 = vrot.lane.b32.xlu0 %v50, 72
    %v74 = vpop.permute.xlu0 %73
    %83 = vst.msk [vmem:[%s2] sm:$0xff] %vm34, %v60
    %84 = vst.msk [vmem:[%s2 + $0x8] sm:$0xff] %vm34, %v62
    %85 = vst.msk [vmem:[%s2 + $0x10] sm:$0xff] %vm34, %v64
    %86 = vst.msk [vmem:[%s2 + $0x18] sm:$0xff] %vm34, %v66
    %87 = vst.msk [vmem:[%s2 + $0x20] sm:$0xff] %vm34, %v68
    %88 = vst.msk [vmem:[%s2 + $0x28] sm:$0xff] %vm34, %v70
    %89 = vst.msk [vmem:[%s2 + $0x30] sm:$0xff] %vm34, %v72
    %90 = vst.msk [vmem:[%s2 + $0x38] sm:$0xff] %vm34, %v74
    %v91 = vld [vmem:[#allocation2] sm:$0xff]
    %v92 = vld [vmem:[#allocation2 + $0x8] sm:$0xff]
    %v93 = vld [vmem:[#allocation2 + $0x10] sm:$0xff]
    %v94 = vld [vmem:[#allocation2 + $0x18] sm:$0xff]
    %v95 = vld [vmem:[#allocation2 + $0x20] sm:$0xff]
    %v96 = vld [vmem:[#allocation2 + $0x28] sm:$0xff]
    %v97 = vld [vmem:[#allocation2 + $0x30] sm:$0xff]
    %v98 = vld [vmem:[#allocation2 + $0x38] sm:$0xff]
    %v99 = vld [vmem:[#allocation2 + $0x40] sm:$0xff]
    %v100 = vld [vmem:[#allocation2 + $0x48] sm:$0xff]
    %v101 = vld [vmem:[#allocation2 + $0x50] sm:$0xff]
    %v102 = vld [vmem:[#allocation2 + $0x58] sm:$0xff]
    %v103 = vld [vmem:[#allocation2 + $0x60] sm:$0xff]
    %v104 = vld [vmem:[#allocation2 + $0x68] sm:$0xff]
    %v105 = vld [vmem:[#allocation2 + $0x70] sm:$0xff]
    %v106 = vld [vmem:[#allocation2 + $0x78] sm:$0xff]
    %123 = vrot.lane.b32.xlu0 %v91, 16
    %v124 = vpop.permute.xlu0 %123
    %125 = vrot.lane.b32.xlu0 %v92, 16
    %v126 = vpop.permute.xlu0 %125
    %127 = vrot.lane.b32.xlu0 %v93, 16
    %v128 = vpop.permute.xlu0 %127
    %129 = vrot.lane.b32.xlu0 %v94, 16
    %v130 = vpop.permute.xlu0 %129
    %131 = vrot.lane.b32.xlu0 %v95, 16
    %v132 = vpop.permute.xlu0 %131
    %133 = vrot.lane.b32.xlu0 %v96, 16
    %v134 = vpop.permute.xlu0 %133
    %135 = vrot.lane.b32.xlu0 %v97, 16
    %v136 = vpop.permute.xlu0 %135
    %137 = vrot.lane.b32.xlu0 %v98, 16
    %v138 = vpop.permute.xlu0 %137
    %139 = vrot.lane.b32.xlu0 %v99, 16
    %v140 = vpop.permute.xlu0 %139
    %141 = vrot.lane.b32.xlu0 %v100, 16
    %v142 = vpop.permute.xlu0 %141
    %143 = vrot.lane.b32.xlu0 %v101, 16
    %v144 = vpop.permute.xlu0 %143
    %145 = vrot.lane.b32.xlu0 %v102, 16
    %v146 = vpop.permute.xlu0 %145
    %147 = vrot.lane.b32.xlu0 %v103, 16
    %v148 = vpop.permute.xlu0 %147
    %149 = vrot.lane.b32.xlu0 %v104, 16
    %v150 = vpop.permute.xlu0 %149
    %151 = vrot.lane.b32.xlu0 %v105, 16
    %v152 = vpop.permute.xlu0 %151
    %153 = vrot.lane.b32.xlu0 %v106, 16
    %v154 = vpop.permute.xlu0 %153
    %vm155 = vcmask 130048
    %v156 = vsel %vm155, %v124, %v126
    %v157 = vsel %vm155, %v128, %v130
    %v158 = vsel %vm155, %v132, %v134
    %v159 = vsel %vm155, %v136, %v138
    %v160 = vsel %vm155, %v140, %v142
    %v161 = vsel %vm155, %v144, %v146
    %v162 = vsel %vm155, %v148, %v150
    %v163 = vsel %vm155, %v152, %v154
    %172 = vst.msk [vmem:[%s3] sm:$0xff] %vm34, %v156
    %173 = vst.msk [vmem:[%s3 + $0x8] sm:$0xff] %vm34, %v157
    %174 = vst.msk [vmem:[%s3 + $0x10] sm:$0xff] %vm34, %v158
    %175 = vst.msk [vmem:[%s3 + $0x18] sm:$0xff] %vm34, %v159
    %176 = vst.msk [vmem:[%s3 + $0x20] sm:$0xff] %vm34, %v160
    %177 = vst.msk [vmem:[%s3 + $0x28] sm:$0xff] %vm34, %v161
    %178 = vst.msk [vmem:[%s3 + $0x30] sm:$0xff] %vm34, %v162
    %179 = vst.msk [vmem:[%s3 + $0x38] sm:$0xff] %vm34, %v163
    %v180 = vld [vmem:[#allocation2 + $0x8] sm:$0xff]
    %v181 = vld [vmem:[#allocation2 + $0x18] sm:$0xff]
    %v182 = vld [vmem:[#allocation2 + $0x28] sm:$0xff]
    %v183 = vld [vmem:[#allocation2 + $0x38] sm:$0xff]
    %v184 = vld [vmem:[#allocation2 + $0x48] sm:$0xff]
    %v185 = vld [vmem:[#allocation2 + $0x58] sm:$0xff]
    %v186 = vld [vmem:[#allocation2 + $0x68] sm:$0xff]
    %v187 = vld [vmem:[#allocation2 + $0x78] sm:$0xff]
    %196 = vrot.lane.b32.xlu0 %v180, 88
    %v197 = vpop.permute.xlu0 %196
    %198 = vrot.lane.b32.xlu0 %v181, 88
    %v199 = vpop.permute.xlu0 %198
    %200 = vrot.lane.b32.xlu0 %v182, 88
    %v201 = vpop.permute.xlu0 %200
    %202 = vrot.lane.b32.xlu0 %v183, 88
    %v203 = vpop.permute.xlu0 %202
    %204 = vrot.lane.b32.xlu0 %v184, 88
    %v205 = vpop.permute.xlu0 %204
    %206 = vrot.lane.b32.xlu0 %v185, 88
    %v207 = vpop.permute.xlu0 %206
    %208 = vrot.lane.b32.xlu0 %v186, 88
    %v209 = vpop.permute.xlu0 %208
    %210 = vrot.lane.b32.xlu0 %v187, 88
    %v211 = vpop.permute.xlu0 %210
    %220 = vst.msk [vmem:[%s4] sm:$0xff] %vm34, %v197
    %221 = vst.msk [vmem:[%s4 + $0x8] sm:$0xff] %vm34, %v199
    %222 = vst.msk [vmem:[%s4 + $0x10] sm:$0xff] %vm34, %v201
    %223 = vst.msk [vmem:[%s4 + $0x18] sm:$0xff] %vm34, %v203
    %224 = vst.msk [vmem:[%s4 + $0x20] sm:$0xff] %vm34, %v205
    %225 = vst.msk [vmem:[%s4 + $0x28] sm:$0xff] %vm34, %v207
    %226 = vst.msk [vmem:[%s4 + $0x30] sm:$0xff] %vm34, %v209
    %227 = vst.msk [vmem:[%s4 + $0x38] sm:$0xff] %vm34, %v211
    // Predicated region
    $region10: #{tpu_custom_call.1} parent=1 // pred_check
      _
    $region11: #{tpu_custom_call.1} parent=1 // pred_check_branch
      %229 = sbr.rel (0) target = $region13
    $region12: #{tpu_custom_call.1} parent=1 // pred_region
      _
    $region13: #{tpu_custom_call.1} parent=1 // pred_fallthru
      _
    // Predicated region
    $region14: #{tpu_custom_call.1} parent=1 // pred_check
      _
    $region15: #{tpu_custom_call.1} parent=1 // pred_check_branch
      %231 = sbr.rel (0) target = $region17
    $region16: #{tpu_custom_call.1} parent=1 // pred_region
      _
    $region17: #{tpu_custom_call.1} parent=1 // pred_fallthru
      _
    // Predicated region
    $region18: #{tpu_custom_call.1} parent=1 // pred_check
      _
    $region19: #{tpu_custom_call.1} parent=1 // pred_check_branch
      %233 = sbr.rel (0) target = $region21
    $region20: #{tpu_custom_call.1} parent=1 // pred_region
      _
    $region21: #{tpu_custom_call.1} parent=1 // pred_fallthru
      _
    // Predicated region
    $region22: #{tpu_custom_call.1} parent=1 // pred_check
      _
    $region23: #{tpu_custom_call.1} parent=1 // pred_check_branch
      %235 = sbr.rel (0) target = $region25
    $region24: #{tpu_custom_call.1} parent=1 // pred_region
      _
    $region25: #{tpu_custom_call.1} parent=1 // pred_fallthru
      _
    // Predicated region
    $region26: #{tpu_custom_call.1} parent=1 // pred_check
      _
    $region27: #{tpu_custom_call.1} parent=1 // pred_check_branch
      %237 = sbr.rel (0) target = $region29
    $region28: #{tpu_custom_call.1} parent=1 // pred_region
      _
    $region29: #{tpu_custom_call.1} parent=1 // pred_fallthru
      _
    // Predicated region
    $region30: #{tpu_custom_call.1} parent=1 // pred_check
      _
    $region31: #{tpu_custom_call.1} parent=1 // pred_check_branch
      %239 = sbr.rel (0) target = $region33
    $region32: #{tpu_custom_call.1} parent=1 // pred_region
      _
    $region33: #{tpu_custom_call.1} parent=1 // pred_fallthru
      _
    // Predicated region
    $region34: #{tpu_custom_call.1} parent=1 // pred_check
      _
    $region35: #{tpu_custom_call.1} parent=1 // pred_check_branch
      %241 = sbr.rel (0) target = $region37
    $region36: #{tpu_custom_call.1} parent=1 // pred_region
      _
    $region37: #{tpu_custom_call.1} parent=1 // pred_fallthru
      _
    // Predicated region
    $region38: #{tpu_custom_call.1} parent=1 // pred_check
      _
    $region39: #{tpu_custom_call.1} parent=1 // pred_check_branch
      %243 = sbr.rel (0) target = $region41
    $region40: #{tpu_custom_call.1} parent=1 // pred_region
      _
    $region41: #{tpu_custom_call.1} parent=1 // pred_fallthru
      _
    %244 = vsyncpa [#allocation3], 1

</llo_original>
